<compile_context>
chip_gen: v7x
topology: tpu7x:2x2x1
jax: 0.10.0
libtpu: 0.0.40
codegen_flags: <defaults>
</compile_context>

<pallas_src>
import math
import functools

import jax
import jax.numpy as jnp
from jax.experimental import pallas as pl
from jax.experimental.pallas import tpu as pltpu


# ----------------------------------------------------------------------------
# Kernel
# ----------------------------------------------------------------------------
def _embedding_kernel(*refs, freqs, identity, apply_weights):
    """One batch tile in transposed (batch-on-lanes) layout.

    refs (apply_weights=True):  w_ref (n_freqs*C, 1), x_ref (C, tb), o_ref
    refs (apply_weights=False): x_ref (C, tb), o_ref
    freqs: tuple of python floats (compile-time constants, static module cfg)
    """
    if apply_weights:
        w_ref, x_ref, o_ref = refs
    else:
        x_ref, o_ref = refs

    C = x_ref.shape[0]
    n_freqs = len(freqs)
    x = x_ref[...].astype(jnp.float32)                       # (C, tb)

    parts = [x] if identity else []
    if n_freqs:
        # Stack all bands along the sublane axis so sin/cos run once over a
        # (n_freqs*C, tb) array at (near-)full vreg occupancy, instead of
        # 2*n_freqs calls over 3/8-full (C, tb) tiles.
        xf_parts = [x if f == 1.0 else f * x for f in freqs]
        xf = xf_parts[0] if n_freqs == 1 else jnp.concatenate(xf_parts, axis=0)
        s = jnp.sin(xf)                                      # (n_freqs*C, tb)
        c = jnp.cos(xf)
        if apply_weights:
            w = w_ref[...].astype(jnp.float32)               # (n_freqs*C, 1)
            s = s * w
            c = c * w
        # Interleave [sin_j, cos_j] per band in output-channel order.
        for j in range(n_freqs):
            parts.append(s[j * C:(j + 1) * C, :])
            parts.append(c[j * C:(j + 1) * C, :])

    out = parts[0] if len(parts) == 1 else jnp.concatenate(parts, axis=0)
    o_ref[...] = out.astype(o_ref.dtype)                     # single full-tile store


# ----------------------------------------------------------------------------
# Host-side static frequency bands / runtime annealing weights
# ----------------------------------------------------------------------------
def _freq_bands(n_freqs, logscale):
    if n_freqs == 0:
        return ()
    if logscale:
        return tuple(float(2.0 ** j) for j in range(n_freqs))
    if n_freqs == 1:
        return (1.0,)
    hi = 2.0 ** (n_freqs - 1)
    return tuple(1.0 + j * (hi - 1.0) / (n_freqs - 1) for j in range(n_freqs))


def _weight_column(n_freqs, in_channels, annealed_step, annealed_begin_step, step):
    """Runtime (n_freqs*C, 1) f32 annealing-weight column (traced-step safe)."""
    if step is None:
        step = annealed_begin_step + annealed_step
    step = jnp.asarray(step, jnp.float32)
    alpha = jnp.where(
        step < annealed_begin_step,
        jnp.float32(0.0),
        jnp.float32(n_freqs) * (step - annealed_begin_step) / float(annealed_step),
    )
    idx = jnp.arange(n_freqs, dtype=jnp.float32)
    w = (1.0 - jnp.cos(jnp.pi * jnp.clip(alpha - idx, 0.0, 1.0))) / 2.0
    return jnp.repeat(w, in_channels)[:, None]               # (n_freqs*C, 1)


# ----------------------------------------------------------------------------
# Wrapper
# ----------------------------------------------------------------------------
def embedding_forward(
    x,
    n_freqs: int,
    annealed_step: int = 0,
    annealed_begin_step: int = 0,
    logscale: bool = True,
    identity: bool = True,
    step=None,                     # python int or traced scalar; no recompile
    batch_tile: int = 16384,       # lane columns per grid step (multiple of 128)
    out_dtype=None,                # jnp.bfloat16 recommended on v5e (HBM-write bound)
    transpose_output: bool = True, # False -> return lane-dense (out_channels, B)
):
    """Pallas equivalent of Embedding.forward.  x: (B, in_channels)."""
    B, C = x.shape
    out_dtype = x.dtype if out_dtype is None else out_dtype

    n_parts = 2 * n_freqs + (1 if identity else 0)
    out_channels = C * n_parts
    if out_channels == 0:                        # (not identity) and n_freqs == 0
        return jnp.zeros((B, 0), dtype=x.dtype)

    freqs = _freq_bands(n_freqs, logscale)
    # annealed_step == 0  ->  all weights are exactly 1 (static): skip the
    # runtime weight operand and the in-kernel multiply entirely.
    apply_weights = (annealed_step != 0) and n_freqs > 0

    # ---- batch tiling (lane columns of 128) ---------------------------------
    b_groups = pl.cdiv(B, 128)
    tb_groups = max(1, min(max(batch_tile, 128) // 128, b_groups))

    # VMEM budget clamp: double-buffered I/O + stacked f32 temporaries.
    out_itemsize = jnp.dtype(out_dtype).itemsize
    per_col_bytes = (2 * 4 * C                    # input, double buffered
                     + 2 * out_itemsize * out_channels   # output, double buffered
                     + 12 * n_freqs * C           # xf / sin / cos stacks (f32)
                     + 4 * out_channels + 64)     # assembled tile + slack
    vmem_budget = 20 << 20                        # safe under 32 MiB scoped (v7x)
    tb_groups = max(1, min(tb_groups, (vmem_budget // per_col_bytes) // 128))

    # v7x megacore: keep >=2 grid steps whenever the batch spans >=2 lane groups.
    if b_groups >= 2 and pl.cdiv(b_groups, tb_groups) < 2:
        tb_groups = pl.cdiv(b_groups, 2)

    tb = 128 * tb_groups
    n_tiles = pl.cdiv(b_groups, tb_groups)
    b_pad = n_tiles * tb

    # transpose so batch sits on lanes; pad batch to the tile boundary
    x_t = jnp.transpose(x)                        # (C, B)
    if b_pad != B:
        x_t = jnp.pad(x_t, ((0, 0), (0, b_pad - B)))

    kernel = functools.partial(
        _embedding_kernel,
        freqs=freqs, identity=identity, apply_weights=apply_weights,
    )

    in_specs = []
    args = []
    if apply_weights:
        w_col = _weight_column(n_freqs, C, annealed_step, annealed_begin_step, step)
        in_specs.append(pl.BlockSpec((n_freqs * C, 1), lambda i: (0, 0)))
        args.append(w_col)
    in_specs.append(pl.BlockSpec((C, tb), lambda i: (0, i)))
    args.append(x_t)

    out_t = pl.pallas_call(
        kernel,
        out_shape=jax.ShapeDtypeStruct((out_channels, b_pad), out_dtype),
        grid=(n_tiles,),
        in_specs=in_specs,
        out_specs=pl.BlockSpec((out_channels, tb), lambda i: (0, i)),
        compiler_params=pltpu.CompilerParams(
            dimension_semantics=("parallel",)),
    )(*args)

    if not transpose_output:
        # lane-dense (out_channels, B); consumer fuses/consumes transposed
        return out_t[:, :B]

    out = jnp.transpose(out_t)                    # (b_pad, out_channels)
    if b_pad != B:
        out = out[:B]
    return out


# ----------------------------------------------------------------------------
# Pure-JAX reference mirroring the PyTorch forward exactly
# ----------------------------------------------------------------------------
def embedding_reference(x, n_freqs, annealed_step=0, annealed_begin_step=0,
                        logscale=True, identity=True, step=None):
    if (not identity) and n_freqs == 0:
        return jnp.zeros(x.shape[:-1] + (0,), x.dtype)
    if step is None:
        step = annealed_begin_step + annealed_step
    if annealed_step == 0:
        alpha = float(n_freqs)
    elif step < annealed_begin_step:
        alpha = 0.0
    else:
        alpha = n_freqs * (step - annealed_begin_step) / float(annealed_step)
    if logscale:
        freq_bands = 2.0 ** jnp.linspace(0.0, n_freqs - 1, n_freqs)
    else:
        freq_bands = jnp.linspace(1.0, 2.0 ** (n_freqs - 1), n_freqs)
    index = jnp.linspace(0.0, n_freqs - 1, n_freqs)
    out = [x] if identity else []
    for j in range(n_freqs):
        wj = (1.0 - jnp.cos(math.pi * jnp.clip(alpha - index[j], 0.0, 1.0))) / 2.0
        out.append(wj * jnp.sin(freq_bands[j] * x))
        out.append(wj * jnp.cos(freq_bands[j] * x))
    return jnp.concatenate(out, axis=-1)


if __name__ == "__main__":
    key = jax.random.PRNGKey(0)
    B, C, N_FREQS = 200, 3, 4          # non-multiple-of-128 batch exercises padding
    x = jax.random.normal(key, (B, C), dtype=jnp.float32)

    # Case 1: default (no annealing) — static all-ones weights, no weight operand.
    out1 = embedding_forward(x, N_FREQS)
    ref1 = embedding_reference(x, N_FREQS)

    # Case 2: mid-annealing — runtime weight column {1, 1, ~0.345, 0}.
    out2 = embedding_forward(x, N_FREQS, annealed_step=10, annealed_begin_step=0, step=6)
    ref2 = embedding_reference(x, N_FREQS, annealed_step=10, annealed_begin_step=0, step=6)

    # Case 3: linear frequency spacing, no identity channel.
    out3 = embedding_forward(x, N_FREQS, logscale=False, identity=False)
    ref3 = embedding_reference(x, N_FREQS, logscale=False, identity=False)

    # Case 4: lane-dense (out_channels, B) output (no wrapper transpose).
    out4 = embedding_forward(x, N_FREQS, transpose_output=False)

    jax.block_until_ready((out1, out2, out3, out4))

    assert out1.shape == (B, C * (2 * N_FREQS + 1)), out1.shape
    assert out3.shape == (B, C * 2 * N_FREQS), out3.shape
    assert out4.shape == (C * (2 * N_FREQS + 1), B), out4.shape
    assert jnp.allclose(out1, ref1, atol=1e-5, rtol=1e-5)
    assert jnp.allclose(out2, ref2, atol=1e-5, rtol=1e-5)
    assert jnp.allclose(out3, ref3, atol=1e-5, rtol=1e-5)
    assert jnp.allclose(out4, ref1.T, atol=1e-5, rtol=1e-5)
    print("KERNEL_OK")
</pallas_src>

<mosaic_0001>
module attributes {stable_mosaic.version = 11 : i64} {
  func.func @_embedding_kernel(%arg0: i32, %arg1: memref<3x128xf32, #tpu.memory_space<vmem>>, %arg2: memref<27x128xf32, #tpu.memory_space<vmem>>) attributes {dimension_semantics = [#tpu.dimension_semantics<parallel>], iteration_bounds = array<i64: 2>, scalar_prefetch = 0 : i64, scratch_operands = 0 : i64, tpu.core_type = #tpu.core_type<tc>, window_params = [{transform_indices = @transform_0, window_bounds = array<i64: 3, 128>}, {transform_indices = @transform_1, window_bounds = array<i64: 27, 128>}]} {
    %c0 = arith.constant 0 : index
    %c0_0 = arith.constant 0 : index
    %0 = vector.load %arg1[%c0, %c0_0] : memref<3x128xf32, #tpu.memory_space<vmem>>, vector<3x128xf32>
    %cst = arith.constant 2.000000e+00 : f32
    %1 = vector.broadcast %cst : f32 to vector<3x128xf32>
    %2 = arith.mulf %1, %0 : vector<3x128xf32>
    %cst_1 = arith.constant 4.000000e+00 : f32
    %3 = vector.broadcast %cst_1 : f32 to vector<3x128xf32>
    %4 = arith.mulf %3, %0 : vector<3x128xf32>
    %cst_2 = arith.constant 8.000000e+00 : f32
    %5 = vector.broadcast %cst_2 : f32 to vector<3x128xf32>
    %6 = arith.mulf %5, %0 : vector<3x128xf32>
    %7 = tpu.concatenate %0, %2, %4, %6 in 0 : vector<3x128xf32>, vector<3x128xf32>, vector<3x128xf32>, vector<3x128xf32> -> vector<12x128xf32>
    %8 = math.sin %7 : vector<12x128xf32>
    %9 = math.cos %7 : vector<12x128xf32>
    %10 = vector.extract_strided_slice %8 {offsets = [0, 0], sizes = [3, 128], strides = [1, 1]} : vector<12x128xf32> to vector<3x128xf32>
    %11 = vector.extract_strided_slice %9 {offsets = [0, 0], sizes = [3, 128], strides = [1, 1]} : vector<12x128xf32> to vector<3x128xf32>
    %12 = vector.extract_strided_slice %8 {offsets = [3, 0], sizes = [3, 128], strides = [1, 1]} : vector<12x128xf32> to vector<3x128xf32>
    %13 = vector.extract_strided_slice %9 {offsets = [3, 0], sizes = [3, 128], strides = [1, 1]} : vector<12x128xf32> to vector<3x128xf32>
    %14 = vector.extract_strided_slice %8 {offsets = [6, 0], sizes = [3, 128], strides = [1, 1]} : vector<12x128xf32> to vector<3x128xf32>
    %15 = vector.extract_strided_slice %9 {offsets = [6, 0], sizes = [3, 128], strides = [1, 1]} : vector<12x128xf32> to vector<3x128xf32>
    %16 = vector.extract_strided_slice %8 {offsets = [9, 0], sizes = [3, 128], strides = [1, 1]} : vector<12x128xf32> to vector<3x128xf32>
    %17 = vector.extract_strided_slice %9 {offsets = [9, 0], sizes = [3, 128], strides = [1, 1]} : vector<12x128xf32> to vector<3x128xf32>
    %18 = tpu.concatenate %0, %10, %11, %12, %13, %14, %15, %16, %17 in 0 : vector<3x128xf32>, vector<3x128xf32>, vector<3x128xf32>, vector<3x128xf32>, vector<3x128xf32>, vector<3x128xf32>, vector<3x128xf32>, vector<3x128xf32>, vector<3x128xf32> -> vector<27x128xf32>
    %c0_3 = arith.constant 0 : index
    %c0_4 = arith.constant 0 : index
    %19 = vector.load %arg2[%c0_3, %c0_4] : memref<27x128xf32, #tpu.memory_space<vmem>>, vector<27x128xf32>
    tpu.vector_store %arg2[%c0_3, %c0_4], %18 {strides = array<i32>} : memref<27x128xf32, #tpu.memory_space<vmem>>, vector<27x128xf32>,
    return
  }
  func.func @transform_0(%arg0: i32) -> (i32, i32) {
    %c0_i32 = arith.constant 0 : i32
    %c0_i32_0 = arith.constant 0 : i32
    return %c0_i32, %arg0 : i32, i32
  }
  func.func @transform_1(%arg0: i32) -> (i32, i32) {
    %c0_i32 = arith.constant 0 : i32
    %c0_i32_0 = arith.constant 0 : i32
    return %c0_i32, %arg0 : i32, i32
  }
}

</mosaic_0001>

<llo_original>
// kernel: tpu_custom_call.1
$region0: #{tpu_custom_call.1}
  #allocation0 [shape = 'u32[]', space=smem, size = 0x4, offset = 0x4, fixed_abs, tag = 'smem constant byte address 0x4 - core index']
  #allocation1 [shape = 'u32[144,128]{1,0:T(1,128)}', space=vmem, size = 0x12000, scoped, tag = 'internal scratch']
  %s0 = inlined_call_operand.hbm [shape: f32[3,256], index: 0, kind: input, shape index: {}]
  %s1 = inlined_call_operand.hbm [shape: f32[27,256], index: 1, kind: output, shape index: {}]
  %s2 = sld [smem:[#allocation0]]
  $region41: #{tpu_custom_call.1} parent=0
    _
  %s4 = ssub.s32 1, %s2
  %s5 = scalar_select 0, %s4, %s2
  $region1: #{tpu_custom_call.1} parent=0
    #allocation2 [shape = 'u8[4096]{0}', space=vmem, size = 0x1000, scoped, tag = 'input window, operand 0']
    #allocation3 [shape = 's32[2]{0}', space=sflag, size = 0x8, scoped, tag = 'scoped memory for tpu_custom_call.1']
    #allocation4 [shape = 's32[2]{0}', space=sflag, size = 0x8, scoped, tag = 'scoped memory for tpu_custom_call.1']
    #allocation5 [shape = 'u8[32768]{0}', space=vmem, size = 0x8000, scoped, tag = 'output window, operand 0']
    %6 = vsyncpa [#allocation3], 0
    %s7 = scalar_lea.sflag [#allocation3], 1
    %8 = vsyncpa %s7, 0
    %9 = vsyncpa [#allocation4], 0
    %s10 = scalar_lea.sflag [#allocation4], 1
    %11 = vsyncpa %s10, 0
    loop: start=0, step=1, limit=4
    $region2: #{tpu_custom_call.1} parent=1 // loop_pre_header
      _
    $region3: #{tpu_custom_call.1} parent=1 // loop_header
      %s13 = sphi 0, %s17
      %p14 = scmp.ge.s32.totalorder %s13, 4
      %s23 = sphi 0, %s25
      %s26 = sphi 0, %s23
      %s27 = sphi 0, %s26
      %s43 = sphi 0, %s27
      %s49 = sphi 0, %s51
      %s52 = sphi 0, %s49
      %s53 = sphi 0, %s52
      %s69 = sphi 0, %s53
    $region4: #{tpu_custom_call.1} parent=1 // loop_header_branch
      %16 = sbr.rel (%p14) target = $region8
    $region5: #{tpu_custom_call.1} parent=1 // loop_body
      %s18 = ssub.s32 %s13, 1
      %s19 = ssub.s32 %s13, 2
      %s20 = sadd.s32 %s13, 1
      %s21 = ssub.s32 %s13, %s20
      %p22 = scmp.eq.s32.totalorder %s21, 0
      %s24 = sadd.s32 %s23, 1
      %s25 = scalar_select %p22, %s23, %s24
      %p28 = pneg %p22
      %p29 = scmp.eq.s32.totalorder %s13, 1
      %p30 = por %p28, %p29
      %p31 = scmp.ne.s32.totalorder %s23, %s26
      %p32 = scmp.eq.s32.totalorder %s13, 0
      %p33 = por %p31, %p32
      %p34 = scmp.ne.s32.totalorder %s23, %s26
      %p35 = scmp.eq.s32.totalorder %s18, 1
      %p36 = por %p34, %p35
      %p37 = scmp.ne.s32.totalorder %s26, %s27
      %p38 = scmp.eq.s32.totalorder %s18, 0
      %p39 = por %p37, %p38
      %p40 = scmp.ne.s32.totalorder %s26, %s27
      %p41 = scmp.eq.s32.totalorder %s19, 1
      %p42 = por %p40, %p41
      %p44 = scmp.ne.s32.totalorder %s27, %s43
      %p45 = scmp.eq.s32.totalorder %s19, 0
      %p46 = por %p44, %p45
      %s47 = ssub.s32 %s13, %s20
      %p48 = scmp.eq.s32.totalorder %s47, 0
      %s50 = sadd.s32 %s49, 1
      %s51 = scalar_select %p48, %s49, %s50
      %p54 = pneg %p48
      %p55 = scmp.eq.s32.totalorder %s13, 1
      %p56 = por %p54, %p55
      %p57 = scmp.ne.s32.totalorder %s49, %s52
      %p58 = scmp.eq.s32.totalorder %s13, 0
      %p59 = por %p57, %p58
      %p60 = scmp.ne.s32.totalorder %s49, %s52
      %p61 = scmp.eq.s32.totalorder %s18, 1
      %p62 = por %p60, %p61
      %p63 = scmp.ne.s32.totalorder %s52, %s53
      %p64 = scmp.eq.s32.totalorder %s18, 0
      %p65 = por %p63, %p64
      %p66 = scmp.ne.s32.totalorder %s52, %s53
      %p67 = scmp.eq.s32.totalorder %s19, 1
      %p68 = por %p66, %p67
      %p70 = scmp.ne.s32.totalorder %s53, %s69
      %p71 = scmp.eq.s32.totalorder %s19, 0
      %p72 = por %p70, %p71
      %p73 = scmp.le.s32.totalorder 1, %s13
      %p74 = scmp.lt.s32.totalorder %s13, 3
      %p75 = pnand %p73, %p74
      %p76 = pneg %p75
      // Predicated region
      $region9: #{tpu_custom_call.1} parent=5 // pred_check
        _
      $region10: #{tpu_custom_call.1} parent=5 // pred_check_branch
        %78 = sbr.rel (%p75) target = $region12
      $region11: #{tpu_custom_call.1} parent=5 // pred_region
        %s79 = ssub.s32 %s13, 1
      $region12: #{tpu_custom_call.1} parent=5 // pred_fallthru
        _
      %p80 = scmp.lt.s32.totalorder %s13, 2
      // Predicated region
      $region13: #{tpu_custom_call.1} parent=5 // pred_check
        %p81 = pneg %p80
      $region14: #{tpu_custom_call.1} parent=5 // pred_check_branch
        %83 = sbr.rel (%p81) target = $region16
      $region15: #{tpu_custom_call.1} parent=5 // pred_region
        // Predicated region
        $region17: #{tpu_custom_call.1} parent=15 // pred_check
          %p84 = pneg %p33
        $region18: #{tpu_custom_call.1} parent=15 // pred_check_branch
          %86 = sbr.rel (%p84) target = $region20
        $region19: #{tpu_custom_call.1} parent=15 // pred_region
          %s87 = sand.u32 %s23, 1
          %s88 = scalar_lea.sflag [#allocation3], %s87
          %s89 = sand.u32 %s23, 1
          %s90 = smul.addr %s89, 4
          %s91 = scalar_lea.vmem [#allocation2], %s90
          %s93 = ssub.s32 64, 64
          %94 = vsyncadd %s88, %s93
          %s95 = smul.addr %s13, 64
          %s96 = scalar_lea.hbm %s0, %s95
          %s98 = sshll.u32 %s91, 4
          %s99 = int_to_ptr.vmem [resolvable:$true] %s98
          %101 = dma.hbm_to_vmem [thread:$0]  %s96, 64, %s99, %s88
        $region20: #{tpu_custom_call.1} parent=15 // pred_fallthru
          _
      $region16: #{tpu_custom_call.1} parent=5 // pred_fallthru
        _
      %p102 = scmp.le.s32.totalorder 1, %s13
      %p103 = scmp.lt.s32.totalorder %s13, 3
      %p104 = pnand %p102, %p103
      %p105 = pneg %p104
      // Predicated region
      $region21: #{tpu_custom_call.1} parent=5 // pred_check
        _
      $region22: #{tpu_custom_call.1} parent=5 // pred_check_branch
        %107 = sbr.rel (%p104) target = $region24
      $region23: #{tpu_custom_call.1} parent=5 // pred_region
        %s108 = ssub.s32 %s13, 1
        %s109 = sand.u32 %s26, 1
        %s110 = scalar_lea.sflag [#allocation3], %s109
        %s111 = sand.u32 %s26, 1
        %s112 = smul.addr %s111, 4
        %s113 = scalar_lea.vmem [#allocation2], %s112
        // Predicated region
        $region25: #{tpu_custom_call.1} parent=23 // pred_check
          %p114 = pneg %p39
        $region26: #{tpu_custom_call.1} parent=23 // pred_check_branch
          %116 = sbr.rel (%p114) target = $region28
        $region27: #{tpu_custom_call.1} parent=23 // pred_region
          %117 = dma.done %s110, 64
        $region28: #{tpu_custom_call.1} parent=23 // pred_fallthru
          _
        %s118 = sand.u32 %s26, 1
        %s119 = scalar_lea.sflag [#allocation3], %s118
        %s120 = sand.u32 %s26, 1
        %s121 = smul.addr %s120, 4
        %s122 = scalar_lea.vmem [#allocation2], %s121
        %p123 = pneg %p39
        %p124 = pneg %p36
        %p125 = pneg %p65
        %p126 = pneg %p62
        %s127 = sand.u32 %s52, 1
        %s128 = scalar_lea.sflag [#allocation4], %s127
        %s129 = sand.u32 %s52, 1
        %s130 = smul.addr %s129, 32
        %s131 = scalar_lea.vmem [#allocation5], %s130
        %v132 = vld [vmem:[%s113] sm:$0x7]
        %v133 = vmul.f32 %v132, 2.0
        %v134 = vmul.f32 %v132, 4.0
        %v135 = vmul.f32 %v132, 8.0
        %v137 = vrot.slane %v133, 5
        %v140 = vrot.slane %v134, 2
        %v143 = vrot.slane %v135, 7
        %vm145 = vcmask 1042432
        %v146 = vsel %vm145, %v132, %v137
        %vm147 = vcmask 1045504
        %v148 = vsel %vm147, %v146, %v140
        %vm149 = vcmask 1040384
        %v150 = vsel %vm149, %v140, %v143
        %v151 = vand.u32 2147483647, %v148
        %vm152 = vcmp.le.f32.partialorder %v151, 0.7853982
        %vm153 = vcmp.lt.s32.totalorder %v148, 0
        %v154 = vand.u32 %v148, 2139095040
        %v155 = vshrl.u32 %v154, 23
        %v156 = vsub.s32 %v155, 127
        %v157 = vand.u32 2147483647, %v148
        %v158 = vand.u32 %v157, 8388607
        %v159 = vor.u32 %v158, 8388608
        %v160 = vsub.s32 0, %v159
        %v161 = vadd.s32 %v156, 1
        %vm162 = vcmp.gt.s32.totalorder %v161, 0
        %v163 = vsel %vm162, %v161, 0
        %v164 = vshrl.u32 %v163, 5
        %v165 = vand.u32 %v163, 31
        %v166 = vsub.s32 32, %v165
        %v167 = vshrl.u32 683565275, %v166
        %v168 = vshll.u32 683565275, %v165
        %v169 = vshrl.u32 2475754826, %v166
        %v170 = vor.u32 %v168, %v169
        %v171 = vshll.u32 2475754826, %v165
        %v172 = vshrl.u32 2131351028, %v166
        %v173 = vor.u32 %v171, %v172
        %v174 = vshll.u32 2131351028, %v165
        %v175 = vshrl.u32 2102212464, %v166
        %v176 = vor.u32 %v174, %v175
        %v177 = vshll.u32 2102212464, %v165
        %v178 = vshrl.u32 920167782, %v166
        %v179 = vor.u32 %v177, %v178
        %v180 = vshll.u32 920167782, %v165
        %v181 = vshrl.u32 1326507024, %v166
        %v182 = vor.u32 %v180, %v181
        %vm183 = vcmp.lt.s32.totalorder %v164, 1
        %vm184 = vcmp.lt.s32.totalorder %v164, 2
        %vm185 = vcmp.lt.s32.totalorder %v164, 3
        %vm186 = vcmp.lt.s32.totalorder %v164, 4
        %v187 = vsel %vm183, %v167, %v170
        %v188 = vsel %vm186, %v176, 2102212464
        %v189 = vsel %vm185, %v173, %v188
        %v190 = vsel %vm184, %v187, %v189
        %v191 = vsel %vm183, %v170, %v173
        %v192 = vsel %vm186, %v179, 920167782
        %v193 = vsel %vm185, %v176, %v192
        %v194 = vsel %vm184, %v191, %v193
        %v195 = vsel %vm183, %v173, %v176
        %v196 = vsel %vm186, %v182, 1326507024
        %v197 = vsel %vm185, %v179, %v196
        %v198 = vsel %vm184, %v195, %v197
        %v199 = vshll.u32 %v159, 8
        %v200 = vmul.u32.u64.compose %v199, %v198
        %v201 = vextract.low.u32 %v200
        %v202 = vextract.high.u32 %v200
        %v203 = vmul.u32.u64.compose %v199, %v194
        %v204 = vextract.low.u32 %v203
        %v205 = vextract.high.u32 %v203
        %v206 = vmul.u32 %v199, %v190
        %v207 = vadd.s32 %v202, %v204
        %vm208 = vc.u32 %v202, %v204
        %v209 = vadd.s32 %v205, 1
        %v210 = vsel %vm208, %v209, %v205
        %v211 = vadd.s32 %v206, %v210
        %v212 = vadd.s32 %v211, 536870912
        %v213 = vshrl.u32 %v212, 30
        %v214 = vshll.u32 %v213, 30
        %v215 = vsub.s32 %v211, %v214
        %vm216 = vcmp.lt.s32.totalorder %v215, 0
        %v217 = vsub.s32 0, %v215
        %v218 = vsel %vm216, %v217, %v215
        %v219 = vclz %v218
        %v220 = vsub.s32 %v219, 2
        %vm221 = vcmp.gt.s32.totalorder 0, %v220
        %v222 = vsel %vm221, 0, %v220
        %v223 = vsub.s32 32, %v222
        %v224 = vshll.u32 %v215, %v222
        %v225 = vshrl.u32 %v207, %v223
        %v226 = vor.u32 %v224, %v225
        %v227 = vsub.s32 4294967266, %v222
        %v228 = vadd.s32 %v227, 127
        %v229 = vshll.u32 %v228, 23
        %v230 = vor.u32 4788187, %v229
        %v231 = vand.u32 2147483647, %v230
        %v233 = vcvt.s32.f32 %v226
        %v234 = vmul.f32 %v233, %v231
        %v235 = vxor.u32 %v234, 2147483648
        %v236 = vsel %vm153, %v235, %v234
        %v237 = vsub.s32 4, %v213
        %v238 = vsel %vm153, %v237, %v213
        %v239 = vsel %vm152, %v148, %v236
        %v240 = vsel %vm152, 0, %v238
        %v241 = vcosq.f32.pop %v239
        %v242 = vsinq.f32.pop %v239
        %vm243 = vweird.f32 %v148
        %v244 = vadd.s32 %v240, 3
        %v245 = vand.u32 %v244, 3
        %vm246 = vcmp.lt.s32.totalorder %v245, 2
        %vm247 = vcmp.eq.s32.totalorder %v245, 0
        %v248 = vxor.u32 %v242, 2147483648
        %v249 = vsel %vm247, %v241, %v248
        %vm250 = vcmp.eq.s32.totalorder %v245, 2
        %v251 = vxor.u32 %v241, 2147483648
        %v252 = vsel %vm250, %v251, %v242
        %v253 = vsel %vm246, %v249, %v252
        %v254 = vsel %vm243, nan, %v253
        %v255 = vand.u32 2147483647, %v150
        %vm256 = vcmp.le.f32.partialorder %v255, 0.7853982
        %vm257 = vcmp.lt.s32.totalorder %v150, 0
        %v258 = vand.u32 %v150, 2139095040
        %v259 = vshrl.u32 %v258, 23
        %v260 = vsub.s32 %v259, 127
        %v261 = vand.u32 2147483647, %v150
        %v262 = vand.u32 %v261, 8388607
        %v263 = vor.u32 %v262, 8388608
        %v264 = vsub.s32 0, %v263
        %v265 = vadd.s32 %v260, 1
        %vm266 = vcmp.gt.s32.totalorder %v265, 0
        %v267 = vsel %vm266, %v265, 0
        %v268 = vshrl.u32 %v267, 5
        %v269 = vand.u32 %v267, 31
        %v270 = vsub.s32 32, %v269
        %v271 = vshrl.u32 683565275, %v270
        %v272 = vshll.u32 683565275, %v269
        %v273 = vshrl.u32 2475754826, %v270
        %v274 = vor.u32 %v272, %v273
        %v275 = vshll.u32 2475754826, %v269
        %v276 = vshrl.u32 2131351028, %v270
        %v277 = vor.u32 %v275, %v276
        %v278 = vshll.u32 2131351028, %v269
        %v279 = vshrl.u32 2102212464, %v270
        %v280 = vor.u32 %v278, %v279
        %v281 = vshll.u32 2102212464, %v269
        %v282 = vshrl.u32 920167782, %v270
        %v283 = vor.u32 %v281, %v282
        %v284 = vshll.u32 920167782, %v269
        %v285 = vshrl.u32 1326507024, %v270
        %v286 = vor.u32 %v284, %v285
        %vm287 = vcmp.lt.s32.totalorder %v268, 1
        %vm288 = vcmp.lt.s32.totalorder %v268, 2
        %vm289 = vcmp.lt.s32.totalorder %v268, 3
        %vm290 = vcmp.lt.s32.totalorder %v268, 4
        %v291 = vsel %vm287, %v271, %v274
        %v292 = vsel %vm290, %v280, 2102212464
        %v293 = vsel %vm289, %v277, %v292
        %v294 = vsel %vm288, %v291, %v293
        %v295 = vsel %vm287, %v274, %v277
        %v296 = vsel %vm290, %v283, 920167782
        %v297 = vsel %vm289, %v280, %v296
        %v298 = vsel %vm288, %v295, %v297
        %v299 = vsel %vm287, %v277, %v280
        %v300 = vsel %vm290, %v286, 1326507024
        %v301 = vsel %vm289, %v283, %v300
        %v302 = vsel %vm288, %v299, %v301
        %v303 = vshll.u32 %v263, 8
        %v304 = vmul.u32.u64.compose %v303, %v302
        %v305 = vextract.low.u32 %v304
        %v306 = vextract.high.u32 %v304
        %v307 = vmul.u32.u64.compose %v303, %v298
        %v308 = vextract.low.u32 %v307
        %v309 = vextract.high.u32 %v307
        %v310 = vmul.u32 %v303, %v294
        %v311 = vadd.s32 %v306, %v308
        %vm312 = vc.u32 %v306, %v308
        %v313 = vadd.s32 %v309, 1
        %v314 = vsel %vm312, %v313, %v309
        %v315 = vadd.s32 %v310, %v314
        %v316 = vadd.s32 %v315, 536870912
        %v317 = vshrl.u32 %v316, 30
        %v318 = vshll.u32 %v317, 30
        %v319 = vsub.s32 %v315, %v318
        %vm320 = vcmp.lt.s32.totalorder %v319, 0
        %v321 = vsub.s32 0, %v319
        %v322 = vsel %vm320, %v321, %v319
        %v323 = vclz %v322
        %v324 = vsub.s32 %v323, 2
        %vm325 = vcmp.gt.s32.totalorder 0, %v324
        %v326 = vsel %vm325, 0, %v324
        %v327 = vsub.s32 32, %v326
        %v328 = vshll.u32 %v319, %v326
        %v329 = vshrl.u32 %v311, %v327
        %v330 = vor.u32 %v328, %v329
        %v331 = vsub.s32 4294967266, %v326
        %v332 = vadd.s32 %v331, 127
        %v333 = vshll.u32 %v332, 23
        %v334 = vor.u32 4788187, %v333
        %v335 = vand.u32 2147483647, %v334
        %v337 = vcvt.s32.f32 %v330
        %v338 = vmul.f32 %v337, %v335
        %v339 = vxor.u32 %v338, 2147483648
        %v340 = vsel %vm257, %v339, %v338
        %v341 = vsub.s32 4, %v317
        %v342 = vsel %vm257, %v341, %v317
        %v343 = vsel %vm256, %v150, %v340
        %v344 = vsel %vm256, 0, %v342
        %v345 = vcosq.f32.pop %v343
        %v346 = vsinq.f32.pop %v343
        %vm347 = vweird.f32 %v150
        %v348 = vadd.s32 %v344, 3
        %v349 = vand.u32 %v348, 3
        %vm350 = vcmp.lt.s32.totalorder %v349, 2
        %vm351 = vcmp.eq.s32.totalorder %v349, 0
        %v352 = vxor.u32 %v346, 2147483648
        %v353 = vsel %vm351, %v345, %v352
        %vm354 = vcmp.eq.s32.totalorder %v349, 2
        %v355 = vxor.u32 %v345, 2147483648
        %v356 = vsel %vm354, %v355, %v346
        %v357 = vsel %vm350, %v353, %v356
        %v358 = vsel %vm347, nan, %v357
        %v359 = vand.u32 2147483647, %v148
        %vm360 = vcmp.le.f32.partialorder %v359, 0.7853982
        %vm361 = vcmp.lt.s32.totalorder %v148, 0
        %v362 = vand.u32 %v148, 2139095040
        %v363 = vshrl.u32 %v362, 23
        %v364 = vsub.s32 %v363, 127
        %v365 = vand.u32 2147483647, %v148
        %v366 = vand.u32 %v365, 8388607
        %v367 = vor.u32 %v366, 8388608
        %v368 = vsub.s32 0, %v367
        %v369 = vadd.s32 %v364, 1
        %vm370 = vcmp.gt.s32.totalorder %v369, 0
        %v371 = vsel %vm370, %v369, 0
        %v372 = vshrl.u32 %v371, 5
        %v373 = vand.u32 %v371, 31
        %v374 = vsub.s32 32, %v373
        %v375 = vshrl.u32 683565275, %v374
        %v376 = vshll.u32 683565275, %v373
        %v377 = vshrl.u32 2475754826, %v374
        %v378 = vor.u32 %v376, %v377
        %v379 = vshll.u32 2475754826, %v373
        %v380 = vshrl.u32 2131351028, %v374
        %v381 = vor.u32 %v379, %v380
        %v382 = vshll.u32 2131351028, %v373
        %v383 = vshrl.u32 2102212464, %v374
        %v384 = vor.u32 %v382, %v383
        %v385 = vshll.u32 2102212464, %v373
        %v386 = vshrl.u32 920167782, %v374
        %v387 = vor.u32 %v385, %v386
        %v388 = vshll.u32 920167782, %v373
        %v389 = vshrl.u32 1326507024, %v374
        %v390 = vor.u32 %v388, %v389
        %vm391 = vcmp.lt.s32.totalorder %v372, 1
        %vm392 = vcmp.lt.s32.totalorder %v372, 2
        %vm393 = vcmp.lt.s32.totalorder %v372, 3
        %vm394 = vcmp.lt.s32.totalorder %v372, 4
        %v395 = vsel %vm391, %v375, %v378
        %v396 = vsel %vm394, %v384, 2102212464
        %v397 = vsel %vm393, %v381, %v396
        %v398 = vsel %vm392, %v395, %v397
        %v399 = vsel %vm391, %v378, %v381
        %v400 = vsel %vm394, %v387, 920167782
        %v401 = vsel %vm393, %v384, %v400
        %v402 = vsel %vm392, %v399, %v401
        %v403 = vsel %vm391, %v381, %v384
        %v404 = vsel %vm394, %v390, 1326507024
        %v405 = vsel %vm393, %v387, %v404
        %v406 = vsel %vm392, %v403, %v405
        %v407 = vshll.u32 %v367, 8
        %v408 = vmul.u32.u64.compose %v407, %v406
        %v409 = vextract.low.u32 %v408
        %v410 = vextract.high.u32 %v408
        %v411 = vmul.u32.u64.compose %v407, %v402
        %v412 = vextract.low.u32 %v411
        %v413 = vextract.high.u32 %v411
        %v414 = vmul.u32 %v407, %v398
        %v415 = vadd.s32 %v410, %v412
        %vm416 = vc.u32 %v410, %v412
        %v417 = vadd.s32 %v413, 1
        %v418 = vsel %vm416, %v417, %v413
        %v419 = vadd.s32 %v414, %v418
        %v420 = vadd.s32 %v419, 536870912
        %v421 = vshrl.u32 %v420, 30
        %v422 = vshll.u32 %v421, 30
        %v423 = vsub.s32 %v419, %v422
        %vm424 = vcmp.lt.s32.totalorder %v423, 0
        %v425 = vsub.s32 0, %v423
        %v426 = vsel %vm424, %v425, %v423
        %v427 = vclz %v426
        %v428 = vsub.s32 %v427, 2
        %vm429 = vcmp.gt.s32.totalorder 0, %v428
        %v430 = vsel %vm429, 0, %v428
        %v431 = vsub.s32 32, %v430
        %v432 = vshll.u32 %v423, %v430
        %v433 = vshrl.u32 %v415, %v431
        %v434 = vor.u32 %v432, %v433
        %v435 = vsub.s32 4294967266, %v430
        %v436 = vadd.s32 %v435, 127
        %v437 = vshll.u32 %v436, 23
        %v438 = vor.u32 4788187, %v437
        %v439 = vand.u32 2147483647, %v438
        %v441 = vcvt.s32.f32 %v434
        %v442 = vmul.f32 %v441, %v439
        %v443 = vxor.u32 %v442, 2147483648
        %v444 = vsel %vm361, %v443, %v442
        %v445 = vsub.s32 4, %v421
        %v446 = vsel %vm361, %v445, %v421
        %v447 = vsel %vm360, %v148, %v444
        %v448 = vsel %vm360, 0, %v446
        %v449 = vcosq.f32.pop %v447
        %v450 = vsinq.f32.pop %v447
        %vm451 = vweird.f32 %v148
        %v452 = vand.u32 %v448, 3
        %vm453 = vcmp.lt.s32.totalorder %v452, 2
        %vm454 = vcmp.eq.s32.totalorder %v452, 0
        %v455 = vxor.u32 %v450, 2147483648
        %v456 = vsel %vm454, %v449, %v455
        %vm457 = vcmp.eq.s32.totalorder %v452, 2
        %v458 = vxor.u32 %v449, 2147483648
        %v459 = vsel %vm457, %v458, %v450
        %v460 = vsel %vm453, %v456, %v459
        %v461 = vsel %vm451, nan, %v460
        %v462 = vand.u32 2147483647, %v150
        %vm463 = vcmp.le.f32.partialorder %v462, 0.7853982
        %vm464 = vcmp.lt.s32.totalorder %v150, 0
        %v465 = vand.u32 %v150, 2139095040
        %v466 = vshrl.u32 %v465, 23
        %v467 = vsub.s32 %v466, 127
        %v468 = vand.u32 2147483647, %v150
        %v469 = vand.u32 %v468, 8388607
        %v470 = vor.u32 %v469, 8388608
        %v471 = vsub.s32 0, %v470
        %v472 = vadd.s32 %v467, 1
        %vm473 = vcmp.gt.s32.totalorder %v472, 0
        %v474 = vsel %vm473, %v472, 0
        %v475 = vshrl.u32 %v474, 5
        %v476 = vand.u32 %v474, 31
        %v477 = vsub.s32 32, %v476
        %v478 = vshrl.u32 683565275, %v477
        %v479 = vshll.u32 683565275, %v476
        %v480 = vshrl.u32 2475754826, %v477
        %v481 = vor.u32 %v479, %v480
        %v482 = vshll.u32 2475754826, %v476
        %v483 = vshrl.u32 2131351028, %v477
        %v484 = vor.u32 %v482, %v483
        %v485 = vshll.u32 2131351028, %v476
        %v486 = vshrl.u32 2102212464, %v477
        %v487 = vor.u32 %v485, %v486
        %v488 = vshll.u32 2102212464, %v476
        %v489 = vshrl.u32 920167782, %v477
        %v490 = vor.u32 %v488, %v489
        %v491 = vshll.u32 920167782, %v476
        %v492 = vshrl.u32 1326507024, %v477
        %v493 = vor.u32 %v491, %v492
        %vm494 = vcmp.lt.s32.totalorder %v475, 1
        %vm495 = vcmp.lt.s32.totalorder %v475, 2
        %vm496 = vcmp.lt.s32.totalorder %v475, 3
        %vm497 = vcmp.lt.s32.totalorder %v475, 4
        %v498 = vsel %vm494, %v478, %v481
        %v499 = vsel %vm497, %v487, 2102212464
        %v500 = vsel %vm496, %v484, %v499
        %v501 = vsel %vm495, %v498, %v500
        %v502 = vsel %vm494, %v481, %v484
        %v503 = vsel %vm497, %v490, 920167782
        %v504 = vsel %vm496, %v487, %v503
        %v505 = vsel %vm495, %v502, %v504
        %v506 = vsel %vm494, %v484, %v487
        %v507 = vsel %vm497, %v493, 1326507024
        %v508 = vsel %vm496, %v490, %v507
        %v509 = vsel %vm495, %v506, %v508
        %v510 = vshll.u32 %v470, 8
        %v511 = vmul.u32.u64.compose %v510, %v509
        %v512 = vextract.low.u32 %v511
        %v513 = vextract.high.u32 %v511
        %v514 = vmul.u32.u64.compose %v510, %v505
        %v515 = vextract.low.u32 %v514
        %v516 = vextract.high.u32 %v514
        %v517 = vmul.u32 %v510, %v501
        %v518 = vadd.s32 %v513, %v515
        %vm519 = vc.u32 %v513, %v515
        %v520 = vadd.s32 %v516, 1
        %v521 = vsel %vm519, %v520, %v516
        %v522 = vadd.s32 %v517, %v521
        %v523 = vadd.s32 %v522, 536870912
        %v524 = vshrl.u32 %v523, 30
        %v525 = vshll.u32 %v524, 30
        %v526 = vsub.s32 %v522, %v525
        %vm527 = vcmp.lt.s32.totalorder %v526, 0
        %v528 = vsub.s32 0, %v526
        %v529 = vsel %vm527, %v528, %v526
        %v530 = vclz %v529
        %v531 = vsub.s32 %v530, 2
        %vm532 = vcmp.gt.s32.totalorder 0, %v531
        %v533 = vsel %vm532, 0, %v531
        %v534 = vsub.s32 32, %v533
        %v535 = vshll.u32 %v526, %v533
        %v536 = vshrl.u32 %v518, %v534
        %v537 = vor.u32 %v535, %v536
        %v538 = vsub.s32 4294967266, %v533
        %v539 = vadd.s32 %v538, 127
        %v540 = vshll.u32 %v539, 23
        %v541 = vor.u32 4788187, %v540
        %v542 = vand.u32 2147483647, %v541
        %v544 = vcvt.s32.f32 %v537
        %v545 = vmul.f32 %v544, %v542
        %v546 = vxor.u32 %v545, 2147483648
        %v547 = vsel %vm464, %v546, %v545
        %v548 = vsub.s32 4, %v524
        %v549 = vsel %vm464, %v548, %v524
        %v550 = vsel %vm463, %v150, %v547
        %v551 = vsel %vm463, 0, %v549
        %v552 = vcosq.f32.pop %v550
        %v553 = vsinq.f32.pop %v550
        %vm554 = vweird.f32 %v150
        %v555 = vand.u32 %v551, 3
        %vm556 = vcmp.lt.s32.totalorder %v555, 2
        %vm557 = vcmp.eq.s32.totalorder %v555, 0
        %v558 = vxor.u32 %v553, 2147483648
        %v559 = vsel %vm557, %v552, %v558
        %vm560 = vcmp.eq.s32.totalorder %v555, 2
        %v561 = vxor.u32 %v552, 2147483648
        %v562 = vsel %vm560, %v561, %v553
        %v563 = vsel %vm556, %v559, %v562
        %v564 = vsel %vm554, nan, %v563
        %v566 = vrot.slane %v254, 5
        %v569 = vrot.slane %v461, 2
        %v571 = vrot.slane %v254, 2
        %v573 = vrot.slane %v461, 7
        %v576 = vrot.slane %v254, 7
        %v577 = vrot.slane %v358, 7
        %v578 = vsel %vm149, %v576, %v577
        %vm582 = vcmask 1043456
        %v583 = vrot.slane %v461, 4
        %v584 = vrot.slane %v564, 4
        %v585 = vsel %vm582, %v583, %v584
        %v587 = vrot.slane %v358, 4
        %v589 = vrot.slane %v564, 1
        %v591 = vsel %vm145, %v132, %v566
        %v592 = vsel %vm147, %v591, %v569
        %v593 = vsel %vm149, %v569, %v571
        %v594 = vsel %vm582, %v593, %v573
        %vm595 = vcmask 1046528
        %v596 = vsel %vm595, %v594, %v576
        %vm597 = vcmask 1041408
        %v598 = vsel %vm597, %v578, %v585
        %vm599 = vcmask 1044480
        %v600 = vsel %vm599, %v598, %v587
        %601 = vst [vmem:[%s131] sm:$0xff] %v592
        %602 = vst [vmem:[%s131 + $0x8] sm:$0xff] %v596
        %603 = vst [vmem:[%s131 + $0x10] sm:$0xff] %v600
        %604 = vst [vmem:[%s131 + $0x18] sm:$0x7] %v589
        %s605 = sand.u32 %s52, 1
        %s606 = scalar_lea.sflag [#allocation4], %s605
        %s607 = sand.u32 %s52, 1
        %s608 = smul.addr %s607, 32
        %s609 = scalar_lea.vmem [#allocation5], %s608
        // Predicated region
        $region29: #{tpu_custom_call.1} parent=23 // pred_check
          %p610 = pneg %p62
        $region30: #{tpu_custom_call.1} parent=23 // pred_check_branch
          %612 = sbr.rel (%p610) target = $region32
        $region31: #{tpu_custom_call.1} parent=23 // pred_region
          %s614 = ssub.s32 512, 512
          %615 = vsyncadd %s606, %s614
          %s616 = smul.addr %s18, 128
          %s617 = scalar_lea.hbm %s1, %s616
          %s618 = sshll.u32 %s609, 4
          %s619 = int_to_ptr.vmem [resolvable:$true] %s618
          %624 = dma.vmem_to_hbm [thread:$0]  %s619, 512, %s617, %s606, 128, 256, 8
        $region32: #{tpu_custom_call.1} parent=23 // pred_fallthru
          _
      $region24: #{tpu_custom_call.1} parent=5 // pred_fallthru
        _
      %p625 = scmp.le.s32.totalorder 2, %s13
      // Predicated region
      $region33: #{tpu_custom_call.1} parent=5 // pred_check
        %p626 = pneg %p625
      $region34: #{tpu_custom_call.1} parent=5 // pred_check_branch
        %628 = sbr.rel (%p626) target = $region36
      $region35: #{tpu_custom_call.1} parent=5 // pred_region
        %s629 = ssub.s32 %s13, 2
        // Predicated region
        $region37: #{tpu_custom_call.1} parent=35 // pred_check
          %p630 = pneg %p68
        $region38: #{tpu_custom_call.1} parent=35 // pred_check_branch
          %632 = sbr.rel (%p630) target = $region40
        $region39: #{tpu_custom_call.1} parent=35 // pred_region
          %s633 = sand.u32 %s53, 1
          %s634 = scalar_lea.sflag [#allocation4], %s633
          %s635 = sand.u32 %s53, 1
          %s636 = smul.addr %s635, 32
          %s637 = scalar_lea.vmem [#allocation5], %s636
          %638 = dma.done %s634, 512
        $region40: #{tpu_custom_call.1} parent=35 // pred_fallthru
          _
      $region36: #{tpu_custom_call.1} parent=5 // pred_fallthru
        _
    $region6: #{tpu_custom_call.1} parent=1 // loop_footer
      %s17 = sadd.s32 1, %s13
    $region7: #{tpu_custom_call.1} parent=1 // loop_footer_branch
      %12 = sbr.rel target = $region3
    $region8: #{tpu_custom_call.1} parent=1 // loop_exit
      _
    %639 = vsyncpa [#allocation3], 1
    %s640 = scalar_lea.sflag [#allocation3], 1
    %641 = vsyncpa %s640, 1
    %642 = vsyncpa [#allocation4], 1
    %s643 = scalar_lea.sflag [#allocation4], 1
    %644 = vsyncpa %s643, 1

</llo_original>
